<compile_context>
chip_gen: v7x
topology: tpu7x:2x2x1
jax: 0.10.0
libtpu: 0.0.40
codegen_flags: <defaults>
</compile_context>

<pallas_src>
import math

import jax
import jax.numpy as jnp
from jax.experimental import pallas as pl
from jax.experimental.pallas import tpu as pltpu

_LANE = 128


def _round_up(n, m):
    return ((n + m - 1) // m) * m


def _num_tensorcores():
    """Best-effort TC count (2 on v7x, 1 on v5e/v6e). Falls back to 1."""
    try:
        info = pltpu.get_tpu_info()
        return max(1, int(getattr(info, "num_cores", 1) or 1))
    except Exception:
        return 1


def _sigmoid(x):
    # exp -> EUP; approximate reciprocal (vrcp) -> also EUP slot. Keeps the VALU
    # free compared with the default full-precision logistic divide.
    return pl.reciprocal(1.0 + jnp.exp(-x), approx=True)


# ---------------------------------------------------------------------------
# Fused kernels: all matmuls + sigmoids in one body; intermediates never leave
# VMEM/vregs. Accumulation is f32 via preferred_element_type; bias-add and
# sigmoid are f32; activations are cast back to the weight dtype (bf16 or f32)
# before feeding the next MXU matmul.
# ---------------------------------------------------------------------------
def _fused_mlp3_kernel(x_ref, w1_ref, b1_ref, w2_ref, b2_ref, wo_ref, bo_ref,
                       o_ref):
    cdt = w1_ref.dtype
    h = _sigmoid(
        jnp.dot(x_ref[...], w1_ref[...], preferred_element_type=jnp.float32)
        + b1_ref[...])
    h = _sigmoid(
        jnp.dot(h.astype(cdt), w2_ref[...], preferred_element_type=jnp.float32)
        + b2_ref[...])
    o = _sigmoid(
        jnp.dot(h.astype(cdt), wo_ref[...], preferred_element_type=jnp.float32)
        + bo_ref[...])
    o_ref[...] = o.astype(o_ref.dtype)


def _fused_mlp2_kernel(x_ref, w1_ref, b1_ref, wo_ref, bo_ref, o_ref):
    cdt = w1_ref.dtype
    h = _sigmoid(
        jnp.dot(x_ref[...], w1_ref[...], preferred_element_type=jnp.float32)
        + b1_ref[...])
    o = _sigmoid(
        jnp.dot(h.astype(cdt), wo_ref[...], preferred_element_type=jnp.float32)
        + bo_ref[...])
    o_ref[...] = o.astype(o_ref.dtype)


# ---------------------------------------------------------------------------
# Tiling / VMEM helpers
# ---------------------------------------------------------------------------
def _pick_batch_tile(B, tile_b_max, num_cores, itemsize):
    """Rows per grid step.

    Big tiles amortize the ~0.35us per-grid-step overhead (512+ rows gets this
    mem-bound kernel to ~85% of the HBM roofline); tiles are multiples of the
    dtype's sublane packing; and we keep at least `num_cores` steps so a
    dual-TC chip (v7x) can shard the "parallel" batch axis across both cores.
    """
    sub = max(8, 32 // max(1, itemsize))          # 8 for f32, 16 for bf16
    tile_b_max = max(sub, (tile_b_max // sub) * sub)
    min_steps = num_cores if B >= 2 * sub * num_cores else 1
    steps = max(min_steps, -(-B // tile_b_max))
    if steps <= 1:
        return B
    tb = -(-B // steps)
    tb = -(-tb // sub) * sub
    return min(tb, B)


def _vmem_limit_bytes(tb, in_dim, out_pad, x_itemsize, out_itemsize,
                      param_bytes, single_buffer):
    x_tiles = 2 * tb * in_dim * x_itemsize        # double-buffered x stream
    o_tiles = 2 * tb * out_pad * out_itemsize     # double-buffered output
    p_bytes = param_bytes * (1 if single_buffer else 2)
    est = x_tiles + o_tiles + p_bytes
    # 2x headroom for compiler scratch; clamp to v7x physical VMEM (64 MiB).
    return int(min(max(2 * est, 16 << 20), 64 << 20))


# ---------------------------------------------------------------------------
# pallas_call wrapper
# ---------------------------------------------------------------------------
def fused_mlp(x, params, *, num_layer, num_classes, tile_b=2048, num_cores=1):
    """x: (B, IN). params: (w1,b1,[w2,b2,]wo,bo), weights in (in,out) layout
    (hidden / output dims zero-padded to 128 multiples), biases (1, out_pad)
    in f32. Returns (B, num_classes)."""
    B, IN = x.shape
    OUT_PAD = params[-1].shape[1]

    tb = _pick_batch_tile(B, tile_b, num_cores, x.dtype.itemsize)
    grid = (pl.cdiv(B, tb),)

    kernel = _fused_mlp3_kernel if num_layer == 2 else _fused_mlp2_kernel

    x_spec = pl.BlockSpec((tb, IN), lambda i: (i, 0))
    out_spec = pl.BlockSpec((tb, OUT_PAD), lambda i: (i, 0))

    # Weights / biases: full-array blocks pinned to (0,0) -> DMA'd once,
    # VMEM-resident across all batch tiles. Once they are big enough to matter
    # for v7x's 64 MiB VMEM, drop them to single-buffering (they never change).
    param_bytes = sum(int(p.size) * p.dtype.itemsize for p in params)
    single_buffer = param_bytes > (4 << 20)

    def _pspec(p):
        if single_buffer:
            return pl.BlockSpec(p.shape, lambda i: (0, 0),
                                pipeline_mode=pl.Buffered(1))
        return pl.BlockSpec(p.shape, lambda i: (0, 0))

    param_specs = [_pspec(p) for p in params]

    vmem_limit = _vmem_limit_bytes(tb, IN, OUT_PAD, x.dtype.itemsize,
                                   x.dtype.itemsize, param_bytes,
                                   single_buffer)

    out = pl.pallas_call(
        kernel,
        out_shape=jax.ShapeDtypeStruct((B, OUT_PAD), x.dtype),
        grid_spec=pltpu.PrefetchScalarGridSpec(
            num_scalar_prefetch=0,
            grid=grid,
            in_specs=[x_spec] + param_specs,
            out_specs=out_spec,
        ),
        compiler_params=pltpu.CompilerParams(
            dimension_semantics=("parallel",),
            vmem_limit_bytes=vmem_limit,
        ),
    )(x, *params)
    # Lane-dense padded result -> real num_classes; the slice fuses in XLA.
    return out[:, :num_classes]


# ---------------------------------------------------------------------------
# Parameter init (PyTorch nn.Linear default: U(-1/sqrt(fan_in), 1/sqrt(fan_in))).
# Weights stored PRE-TRANSPOSED to (in, out) and zero-padded so padded rows /
# columns contribute exactly 0 to the next layer (sigmoid(0)=0.5 in padded
# hidden lanes is multiplied by zero weight rows downstream).
# ---------------------------------------------------------------------------
def init_linear_params(key, in_features, out_features, in_pad, out_pad,
                       w_dtype):
    kw, kb = jax.random.split(key)
    bound = 1.0 / math.sqrt(in_features)
    w = jax.random.uniform(kw, (in_features, out_features), jnp.float32,
                           minval=-bound, maxval=bound)
    b = jax.random.uniform(kb, (1, out_features), jnp.float32,
                           minval=-bound, maxval=bound)
    w_pad = jnp.zeros((in_pad, out_pad), jnp.float32)
    w_pad = w_pad.at[:in_features, :out_features].set(w)
    b_pad = jnp.zeros((1, out_pad), jnp.float32)
    b_pad = b_pad.at[:, :out_features].set(b)
    return w, b, w_pad.astype(w_dtype), b_pad  # bias stays f32 (added post-acc)


class NetPallas:
    def __init__(self, input_size, hidden_size, num_classes, num_layer, key,
                 *, tile_b=2048, param_dtype=jnp.float32, num_cores=None):
        self.num_layer = num_layer
        self.num_classes = num_classes
        h_pad = _round_up(hidden_size, _LANE)
        c_pad = _round_up(num_classes, _LANE)

        k1, k2, k3 = jax.random.split(key, 3)
        self.w1, self.b1, w1p, b1p = init_linear_params(
            k1, input_size, hidden_size, input_size, h_pad, param_dtype)
        padded = [w1p, b1p]
        if num_layer == 2:
            self.w2, self.b2, w2p, b2p = init_linear_params(
                k2, hidden_size, hidden_size, h_pad, h_pad, param_dtype)
            padded += [w2p, b2p]
        self.wo, self.bo, wop, bop = init_linear_params(
            k3, hidden_size, num_classes, h_pad, c_pad, param_dtype)
        padded += [wop, bop]
        self._padded_params = tuple(padded)

        if num_cores is None:
            num_cores = _num_tensorcores()

        def _forward(x, *ps):
            return fused_mlp(x, ps, num_layer=num_layer,
                             num_classes=num_classes, tile_b=tile_b,
                             num_cores=num_cores)

        # One jit around the whole forward -> one dispatch, one pallas_call.
        self._forward = jax.jit(_forward)

    def __call__(self, x):
        return self._forward(x, *self._padded_params)


def _reference_forward(net, x):
    """Pure-JAX reference using the same (padded, possibly bf16) parameter
    values the kernel sees; padding contributes exactly zero."""
    ps = [p.astype(jnp.float32) for p in net._padded_params]
    h = jax.nn.sigmoid(x.astype(jnp.float32) @ ps[0] + ps[1])
    idx = 2
    if net.num_layer == 2:
        h = jax.nn.sigmoid(h @ ps[2] + ps[3])
        idx = 4
    o = jax.nn.sigmoid(h @ ps[idx] + ps[idx + 1])
    return o[:, :net.num_classes]


if __name__ == "__main__":
    key = jax.random.PRNGKey(0)
    k_x1, k_p, k_x2, k_x3 = jax.random.split(key, 4)

    input_size, hidden_size, num_classes, num_layer = 32, 32, 16, 2

    # --- 1) f32, single batch tile (grid=(1,)) ------------------------------
    x = jax.random.normal(k_x1, (8, input_size), jnp.float32)
    net = NetPallas(input_size, hidden_size, num_classes, num_layer, k_p)
    out = jax.block_until_ready(net(x))
    ref = _reference_forward(net, x)
    assert out.shape == (8, num_classes)
    assert jnp.allclose(out.astype(jnp.float32), ref, atol=5e-3, rtol=5e-3)

    # --- 2) f32, tiled batch grid (grid=(4,)), VMEM-resident weights --------
    x2 = jax.random.normal(k_x2, (64, input_size), jnp.float32)
    net2 = NetPallas(input_size, hidden_size, num_classes, num_layer, k_p,
                     tile_b=16)
    out2 = jax.block_until_ready(net2(x2))
    ref2 = _reference_forward(net2, x2)
    assert out2.shape == (64, num_classes)
    assert jnp.allclose(out2.astype(jnp.float32), ref2, atol=5e-3, rtol=5e-3)

    # --- 3) bf16-streamed x + bf16 weights, f32 accumulation, num_layer=1 ---
    x3 = jax.random.normal(k_x3, (32, input_size), jnp.float32).astype(
        jnp.bfloat16)
    net3 = NetPallas(input_size, hidden_size, num_classes, 1, k_p,
                     param_dtype=jnp.bfloat16)
    out3 = jax.block_until_ready(net3(x3))
    ref3 = _reference_forward(net3, x3)
    assert out3.shape == (32, num_classes)
    assert jnp.allclose(out3.astype(jnp.float32), ref3, atol=3e-2, rtol=3e-2)

    print("KERNEL_OK")
</pallas_src>

<mosaic_0001>
module attributes {stable_mosaic.version = 11 : i64} {
  func.func @_fused_mlp3_kernel(%arg0: i32, %arg1: memref<8x32xf32, #tpu.memory_space<vmem>>, %arg2: memref<32x128xf32, #tpu.memory_space<vmem>>, %arg3: memref<1x128xf32, #tpu.memory_space<vmem>>, %arg4: memref<128x128xf32, #tpu.memory_space<vmem>>, %arg5: memref<1x128xf32, #tpu.memory_space<vmem>>, %arg6: memref<128x128xf32, #tpu.memory_space<vmem>>, %arg7: memref<1x128xf32, #tpu.memory_space<vmem>>, %arg8: memref<8x128xf32, #tpu.memory_space<vmem>>) attributes {dimension_semantics = [#tpu.dimension_semantics<parallel>], iteration_bounds = array<i64: 1>, scalar_prefetch = 0 : i64, scratch_operands = 0 : i64, tpu.core_type = #tpu.core_type<tc>, window_params = [{transform_indices = @transform_0, window_bounds = array<i64: 8, 32>}, {pipeline_mode = #tpu.pipeline_mode<synchronous>, transform_indices = @transform_1, window_bounds = array<i64: 32, 128>}, {pipeline_mode = #tpu.pipeline_mode<synchronous>, transform_indices = @transform_2, window_bounds = array<i64: 1, 128>}, {pipeline_mode = #tpu.pipeline_mode<synchronous>, transform_indices = @transform_3, window_bounds = array<i64: 128, 128>}, {pipeline_mode = #tpu.pipeline_mode<synchronous>, transform_indices = @transform_4, window_bounds = array<i64: 1, 128>}, {pipeline_mode = #tpu.pipeline_mode<synchronous>, transform_indices = @transform_5, window_bounds = array<i64: 128, 128>}, {pipeline_mode = #tpu.pipeline_mode<synchronous>, transform_indices = @transform_6, window_bounds = array<i64: 1, 128>}, {transform_indices = @transform_7, window_bounds = array<i64: 8, 128>}]} {
    %c0 = arith.constant 0 : index
    %c0_0 = arith.constant 0 : index
    %0 = vector.load %arg1[%c0, %c0_0] : memref<8x32xf32, #tpu.memory_space<vmem>>, vector<8x32xf32>
    %c0_1 = arith.constant 0 : index
    %c0_2 = arith.constant 0 : index
    %1 = vector.load %arg2[%c0_1, %c0_2] : memref<32x128xf32, #tpu.memory_space<vmem>>, vector<32x128xf32>
    %cst = arith.constant dense<0.000000e+00> : vector<8x128xf32>
    %2 = tpu.matmul %0, %1, %cst {dimension_numbers = #tpu.dot_dimension_numbers<[1], [0], [0], [1], [0, 0, 1, 1], [], []>} : vector<8x32xf32>, vector<32x128xf32>, vector<8x128xf32> -> vector<8x128xf32>
    %c0_3 = arith.constant 0 : index
    %c0_4 = arith.constant 0 : index
    %3 = vector.load %arg3[%c0_3, %c0_4] : memref<1x128xf32, #tpu.memory_space<vmem>>, vector<1x128xf32>
    %4 = vector.broadcast %3 : vector<1x128xf32> to vector<8x128xf32>
    %5 = arith.addf %2, %4 : vector<8x128xf32>
    %cst_5 = arith.constant 0.000000e+00 : f32
    %6 = vector.broadcast %cst_5 : f32 to vector<8x128xf32>
    %7 = arith.subf %6, %5 : vector<8x128xf32>
    %8 = math.exp %7 : vector<8x128xf32>
    %cst_6 = arith.constant 1.000000e+00 : f32
    %9 = vector.broadcast %cst_6 : f32 to vector<8x128xf32>
    %10 = arith.addf %9, %8 : vector<8x128xf32>
    %11 = tpu.reciprocal %10 {approx = true} : vector<8x128xf32> -> vector<8x128xf32>
    %c0_7 = arith.constant 0 : index
    %c0_8 = arith.constant 0 : index
    %12 = vector.load %arg4[%c0_7, %c0_8] : memref<128x128xf32, #tpu.memory_space<vmem>>, vector<128x128xf32>
    %cst_9 = arith.constant dense<0.000000e+00> : vector<8x128xf32>
    %13 = tpu.matmul %11, %12, %cst_9 {dimension_numbers = #tpu.dot_dimension_numbers<[1], [0], [0], [1], [0, 0, 1, 1], [], []>} : vector<8x128xf32>, vector<128x128xf32>, vector<8x128xf32> -> vector<8x128xf32>
    %c0_10 = arith.constant 0 : index
    %c0_11 = arith.constant 0 : index
    %14 = vector.load %arg5[%c0_10, %c0_11] : memref<1x128xf32, #tpu.memory_space<vmem>>, vector<1x128xf32>
    %15 = vector.broadcast %14 : vector<1x128xf32> to vector<8x128xf32>
    %16 = arith.addf %13, %15 : vector<8x128xf32>
    %cst_12 = arith.constant 0.000000e+00 : f32
    %17 = vector.broadcast %cst_12 : f32 to vector<8x128xf32>
    %18 = arith.subf %17, %16 : vector<8x128xf32>
    %19 = math.exp %18 : vector<8x128xf32>
    %cst_13 = arith.constant 1.000000e+00 : f32
    %20 = vector.broadcast %cst_13 : f32 to vector<8x128xf32>
    %21 = arith.addf %20, %19 : vector<8x128xf32>
    %22 = tpu.reciprocal %21 {approx = true} : vector<8x128xf32> -> vector<8x128xf32>
    %c0_14 = arith.constant 0 : index
    %c0_15 = arith.constant 0 : index
    %23 = vector.load %arg6[%c0_14, %c0_15] : memref<128x128xf32, #tpu.memory_space<vmem>>, vector<128x128xf32>
    %cst_16 = arith.constant dense<0.000000e+00> : vector<8x128xf32>
    %24 = tpu.matmul %22, %23, %cst_16 {dimension_numbers = #tpu.dot_dimension_numbers<[1], [0], [0], [1], [0, 0, 1, 1], [], []>} : vector<8x128xf32>, vector<128x128xf32>, vector<8x128xf32> -> vector<8x128xf32>
    %c0_17 = arith.constant 0 : index
    %c0_18 = arith.constant 0 : index
    %25 = vector.load %arg7[%c0_17, %c0_18] : memref<1x128xf32, #tpu.memory_space<vmem>>, vector<1x128xf32>
    %26 = vector.broadcast %25 : vector<1x128xf32> to vector<8x128xf32>
    %27 = arith.addf %24, %26 : vector<8x128xf32>
    %cst_19 = arith.constant 0.000000e+00 : f32
    %28 = vector.broadcast %cst_19 : f32 to vector<8x128xf32>
    %29 = arith.subf %28, %27 : vector<8x128xf32>
    %30 = math.exp %29 : vector<8x128xf32>
    %cst_20 = arith.constant 1.000000e+00 : f32
    %31 = vector.broadcast %cst_20 : f32 to vector<8x128xf32>
    %32 = arith.addf %31, %30 : vector<8x128xf32>
    %33 = tpu.reciprocal %32 {approx = true} : vector<8x128xf32> -> vector<8x128xf32>
    %c0_21 = arith.constant 0 : index
    %c0_22 = arith.constant 0 : index
    %34 = vector.load %arg8[%c0_21, %c0_22] : memref<8x128xf32, #tpu.memory_space<vmem>>, vector<8x128xf32>
    tpu.vector_store %arg8[%c0_21, %c0_22], %33 {strides = array<i32>} : memref<8x128xf32, #tpu.memory_space<vmem>>, vector<8x128xf32>,
    return
  }
  func.func @transform_0(%arg0: i32) -> (i32, i32) {
    %c0_i32 = arith.constant 0 : i32
    %c0_i32_0 = arith.constant 0 : i32
    return %arg0, %c0_i32 : i32, i32
  }
  func.func @transform_1(%arg0: i32) -> (i32, i32) {
    %c0_i32 = arith.constant 0 : i32
    %c0_i32_0 = arith.constant 0 : i32
    %c0_i32_1 = arith.constant 0 : i32
    return %c0_i32, %c0_i32_0 : i32, i32
  }
  func.func @transform_2(%arg0: i32) -> (i32, i32) {
    %c0_i32 = arith.constant 0 : i32
    %c0_i32_0 = arith.constant 0 : i32
    %c0_i32_1 = arith.constant 0 : i32
    return %c0_i32, %c0_i32_0 : i32, i32
  }
  func.func @transform_3(%arg0: i32) -> (i32, i32) {
    %c0_i32 = arith.constant 0 : i32
    %c0_i32_0 = arith.constant 0 : i32
    %c0_i32_1 = arith.constant 0 : i32
    return %c0_i32, %c0_i32_0 : i32, i32
  }
  func.func @transform_4(%arg0: i32) -> (i32, i32) {
    %c0_i32 = arith.constant 0 : i32
    %c0_i32_0 = arith.constant 0 : i32
    %c0_i32_1 = arith.constant 0 : i32
    return %c0_i32, %c0_i32_0 : i32, i32
  }
  func.func @transform_5(%arg0: i32) -> (i32, i32) {
    %c0_i32 = arith.constant 0 : i32
    %c0_i32_0 = arith.constant 0 : i32
    %c0_i32_1 = arith.constant 0 : i32
    return %c0_i32, %c0_i32_0 : i32, i32
  }
  func.func @transform_6(%arg0: i32) -> (i32, i32) {
    %c0_i32 = arith.constant 0 : i32
    %c0_i32_0 = arith.constant 0 : i32
    %c0_i32_1 = arith.constant 0 : i32
    return %c0_i32, %c0_i32_0 : i32, i32
  }
  func.func @transform_7(%arg0: i32) -> (i32, i32) {
    %c0_i32 = arith.constant 0 : i32
    %c0_i32_0 = arith.constant 0 : i32
    return %arg0, %c0_i32 : i32, i32
  }
}

</mosaic_0001>

<llo_original>
// kernel: _forward.1
$region0: #{_forward.1}
  #allocation0 [shape = 'u32[]', space=smem, size = 0x4, offset = 0x4, fixed_abs, tag = 'smem constant byte address 0x4 - core index']
  #allocation1 [shape = 'u32[144,128]{1,0:T(1,128)}', space=vmem, size = 0x12000, scoped, tag = 'internal scratch']
  %s0 = inlined_call_operand.hbm [shape: f32[8,32], index: 0, kind: input, shape index: {}]
  %s1 = inlined_call_operand.hbm [shape: f32[32,128], index: 1, kind: input, shape index: {}]
  %s2 = inlined_call_operand.vmem [shape: f32[1,128], index: 2, kind: input, shape index: {}]
  %s3 = inlined_call_operand.hbm [shape: f32[128,128], index: 3, kind: input, shape index: {}]
  %s4 = inlined_call_operand.vmem [shape: f32[1,128], index: 4, kind: input, shape index: {}]
  %s5 = inlined_call_operand.hbm [shape: f32[128,128], index: 5, kind: input, shape index: {}]
  %s6 = inlined_call_operand.vmem [shape: f32[1,128], index: 6, kind: input, shape index: {}]
  %s7 = inlined_call_operand.hbm [shape: f32[8,128], index: 7, kind: output, shape index: {}]
  %s8 = sld [smem:[#allocation0]]
  $region54: #{_forward.1} parent=0
    _
  %s10 = ssub.s32 1, %s8
  %s11 = scalar_select 0, %s10, %s8
  $region1: #{_forward.1} parent=0
    #allocation2 [shape = 'u8[4096]{0}', space=vmem, size = 0x1000, scoped, tag = 'input window, operand 0, single buffered']
    #allocation3 [shape = 's32[1]{0}', space=sflag, size = 0x4, scoped, tag = 'scoped memory for _forward.1']
    #allocation4 [shape = 's32[1]{0}', space=sflag, size = 0x4, scoped, tag = 'scoped memory for _forward.1']
    #allocation5 [shape = 'u8[16384]{0}', space=vmem, size = 0x4000, scoped, tag = 'input window, operand 1, single buffered']
    #allocation6 [shape = 's32[1]{0}', space=sflag, size = 0x4, scoped, tag = 'scoped memory for _forward.1']
    #allocation7 [shape = 'u8[65536]{0}', space=vmem, size = 0x10000, scoped, tag = 'input window, operand 3, single buffered']
    #allocation8 [shape = 'u8[65536]{0}', space=vmem, size = 0x10000, scoped, tag = 'input window, operand 5, single buffered']
    #allocation9 [shape = 's32[1]{0}', space=sflag, size = 0x4, scoped, tag = 'scoped memory for _forward.1']
    #allocation10 [shape = 'u8[4096]{0}', space=vmem, size = 0x1000, scoped, tag = 'output window, operand 0, single buffered']
    %12 = vsyncpa [#allocation3], 0
    %13 = vsyncpa [#allocation6], 0
    %14 = vsyncpa [#allocation9], 0
    %15 = vsyncpa [#allocation4], 0
    // Predicated region
    $region2: #{_forward.1} parent=1 // pred_check
      _
    $region3: #{_forward.1} parent=1 // pred_check_branch
      %17 = sbr.rel (0) target = $region5
    $region4: #{_forward.1} parent=1 // pred_region
      %s19 = ssub.s32 128, 128
      %20 = vsyncadd [#allocation3], %s19
      %s22 = sshll.u32 [#allocation2], 4
      %s23 = int_to_ptr.vmem [resolvable:$true] %s22
      %25 = dma.hbm_to_vmem [thread:$0]  %s0, 128, %s23, [#allocation3]
    $region5: #{_forward.1} parent=1 // pred_fallthru
      _
    // Predicated region
    $region6: #{_forward.1} parent=1 // pred_check
      _
    $region7: #{_forward.1} parent=1 // pred_check_branch
      %27 = sbr.rel (0) target = $region9
    $region8: #{_forward.1} parent=1 // pred_region
      %s29 = ssub.s32 512, 512
      %30 = vsyncadd [#allocation6], %s29
      %s31 = sshll.u32 [#allocation5], 4
      %s32 = int_to_ptr.vmem [resolvable:$true] %s31
      %37 = dma.hbm_to_vmem [thread:$0]  %s1, 512, %s32, [#allocation6], 128, 128, 8
    $region9: #{_forward.1} parent=1 // pred_fallthru
      _
    // Predicated region
    $region10: #{_forward.1} parent=1 // pred_check
      _
    $region11: #{_forward.1} parent=1 // pred_check_branch
      %39 = sbr.rel (0) target = $region13
    $region12: #{_forward.1} parent=1 // pred_region
      _
    $region13: #{_forward.1} parent=1 // pred_fallthru
      _
    // Predicated region
    $region14: #{_forward.1} parent=1 // pred_check
      _
    $region15: #{_forward.1} parent=1 // pred_check_branch
      %41 = sbr.rel (0) target = $region17
    $region16: #{_forward.1} parent=1 // pred_region
      %s43 = ssub.s32 2048, 2048
      %44 = vsyncadd [#allocation6], %s43
      %s45 = sshll.u32 [#allocation7], 4
      %s46 = int_to_ptr.vmem [resolvable:$true] %s45
      %51 = dma.hbm_to_vmem [thread:$0]  %s3, 2048, %s46, [#allocation6], 128, 128, 8
    $region17: #{_forward.1} parent=1 // pred_fallthru
      _
    // Predicated region
    $region18: #{_forward.1} parent=1 // pred_check
      _
    $region19: #{_forward.1} parent=1 // pred_check_branch
      %53 = sbr.rel (0) target = $region21
    $region20: #{_forward.1} parent=1 // pred_region
      _
    $region21: #{_forward.1} parent=1 // pred_fallthru
      _
    // Predicated region
    $region22: #{_forward.1} parent=1 // pred_check
      _
    $region23: #{_forward.1} parent=1 // pred_check_branch
      %55 = sbr.rel (0) target = $region25
    $region24: #{_forward.1} parent=1 // pred_region
      %s57 = ssub.s32 2048, 2048
      %58 = vsyncadd [#allocation9], %s57
      %s59 = sshll.u32 [#allocation8], 4
      %s60 = int_to_ptr.vmem [resolvable:$true] %s59
      %65 = dma.hbm_to_vmem [thread:$0]  %s5, 2048, %s60, [#allocation9], 128, 128, 8
    $region25: #{_forward.1} parent=1 // pred_fallthru
      _
    // Predicated region
    $region26: #{_forward.1} parent=1 // pred_check
      _
    $region27: #{_forward.1} parent=1 // pred_check_branch
      %67 = sbr.rel (0) target = $region29
    $region28: #{_forward.1} parent=1 // pred_region
      _
    $region29: #{_forward.1} parent=1 // pred_fallthru
      _
    // Predicated region
    $region30: #{_forward.1} parent=1 // pred_check
      _
    $region31: #{_forward.1} parent=1 // pred_check_branch
      %69 = sbr.rel (0) target = $region33
    $region32: #{_forward.1} parent=1 // pred_region
      %70 = dma.done [#allocation3], 128
    $region33: #{_forward.1} parent=1 // pred_fallthru
      _
    // Predicated region
    $region34: #{_forward.1} parent=1 // pred_check
      _
    $region35: #{_forward.1} parent=1 // pred_check_branch
      %72 = sbr.rel (0) target = $region37
    $region36: #{_forward.1} parent=1 // pred_region
      %73 = dma.done [#allocation6], 512
    $region37: #{_forward.1} parent=1 // pred_fallthru
      _
    // Predicated region
    $region38: #{_forward.1} parent=1 // pred_check
      _
    $region39: #{_forward.1} parent=1 // pred_check_branch
      %75 = sbr.rel (0) target = $region41
    $region40: #{_forward.1} parent=1 // pred_region
      %76 = dma.done [#allocation6], 2048
    $region41: #{_forward.1} parent=1 // pred_fallthru
      _
    // Predicated region
    $region42: #{_forward.1} parent=1 // pred_check
      _
    $region43: #{_forward.1} parent=1 // pred_check_branch
      %78 = sbr.rel (0) target = $region45
    $region44: #{_forward.1} parent=1 // pred_region
      %79 = dma.done [#allocation9], 2048
    $region45: #{_forward.1} parent=1 // pred_fallthru
      _
    %v80 = vld [vmem:[#allocation2] sm:$0xff]
    %v81 = vld [vmem:[#allocation5] sm:$0xff]
    %v82 = vld [vmem:[#allocation5 + $0x8] sm:$0xff]
    %v83 = vld [vmem:[#allocation5 + $0x10] sm:$0xff]
    %v84 = vld [vmem:[#allocation5 + $0x18] sm:$0xff]
    %v85 = vld [vmem:[%s2] sm:$0x1]
    %v87 = vlaneseq
    %v88 = vshrl.u32 %v87, 7
    %v89 = vsub.s32 0, %v88
    %v90 = vrot.slane %v85, %v89
    %vm92 = vcmask 261120
    %v94 = vsel %vm92, %v80, 0
    %96 = vmatprep.subr.mxu0 0.0
    %97 = vmatpush1.msra.mxu0 %v81
    %98 = vmatprep.subr.mxu0 0.0
    %99 = vmatpush1.msra.mxu0 %v82
    %100 = vmatprep.subr.mxu0 0.0
    %101 = vmatpush1.msra.mxu0 %v83
    %102 = vmatprep.subr.mxu0 0.0
    %103 = vmatpush1.msra.mxu0 %v84
    %104 = vmatprep.subr.mxu0 0.0
    %105 = vmatpush1.msra.mxu0 0.0
    %106 = vmatprep.subr.mxu0 0.0
    %107 = vmatpush1.msra.mxu0 0.0
    %108 = vmatprep.subr.mxu0 0.0
    %109 = vmatpush1.msra.mxu0 0.0
    %110 = vmatprep.subr.mxu0 0.0
    %111 = vmatpush1.msra.mxu0 0.0
    %112 = vmatprep.subr.mxu0 0.0
    %113 = vmatpush1.msra.mxu0 0.0
    %114 = vmatprep.subr.mxu0 0.0
    %115 = vmatpush1.msra.mxu0 0.0
    %116 = vmatprep.subr.mxu0 0.0
    %117 = vmatpush1.msra.mxu0 0.0
    %118 = vmatprep.subr.mxu0 0.0
    %119 = vmatpush1.msra.mxu0 0.0
    %120 = vmatprep.subr.mxu0 0.0
    %121 = vmatpush1.msra.mxu0 0.0
    %122 = vmatprep.subr.mxu0 0.0
    %123 = vmatpush1.msra.mxu0 0.0
    %124 = vmatprep.subr.mxu0 0.0
    %125 = vmatpush1.msra.mxu0 0.0
    %126 = vmatprep.subr.mxu0 0.0
    %127 = vmatpush1.msra.mxu0 0.0
    %128 = vmatprep.subr.mxu0 0.0
    %129 = vmatpush1.msra.mxu0 0.0
    %130 = vmatprep.subr.mxu0 0.0
    %131 = vmatpush1.msra.mxu0 0.0
    %132 = vmatprep.subr.mxu0 0.0
    %133 = vmatpush1.msra.mxu0 0.0
    %134 = vmatprep.subr.mxu0 0.0
    %135 = vmatpush1.msra.mxu0 0.0
    %136 = vmatprep.subr.mxu0 0.0
    %137 = vmatpush1.msra.mxu0 0.0
    %138 = vmatprep.subr.mxu0 0.0
    %139 = vmatpush1.msra.mxu0 0.0
    %140 = vmatprep.subr.mxu0 0.0
    %141 = vmatpush1.msra.mxu0 0.0
    %142 = vmatprep.subr.mxu0 0.0
    %143 = vmatpush1.msra.mxu0 0.0
    %144 = vmatprep.subr.mxu0 0.0
    %145 = vmatpush1.msra.mxu0 0.0
    %146 = vmatprep.subr.mxu0 0.0
    %147 = vmatpush1.msra.mxu0 0.0
    %148 = vmatprep.subr.mxu0 0.0
    %149 = vmatpush1.msra.mxu0 0.0
    %150 = vmatprep.subr.mxu0 0.0
    %151 = vmatpush1.msra.mxu0 0.0
    %152 = vmatprep.subr.mxu0 0.0
    %153 = vmatpush1.msra.mxu0 0.0
    %154 = vmatprep.subr.mxu0 0.0
    %155 = vmatpush1.msra.mxu0 0.0
    %156 = vmatprep.subr.mxu0 0.0
    %157 = vmatpush1.msra.mxu0 0.0
    %158 = vmatprep.subr.mxu0 0.0
    %159 = vmatpush1.msra.mxu0 0.0
    %160 = vmatprep.mubr.f32.mxu0 0.0
    %161 = vmatmul.mubr.f32.gmra.mrb[0].mxu0 %v94
    %v162 = vpop.f32.mrb[0].mxu0
    %v163 = vadd.f32 %v90, %v162
    %v164 = vpop.f32.mrb[0].mxu0
    %165 = vdwg.mxu0
    %v166 = vsub.f32 0.0, %v163
    %v167 = vmul.f32 %v166, 1.442695
    %v168 = vpow.pop %v167
    %v169 = vadd.f32 %v168, 1.0
    %v170 = vrcp.pop %v169
    %v171 = vld [vmem:[#allocation7] sm:$0xff]
    %v172 = vld [vmem:[#allocation7 + $0x8] sm:$0xff]
    %v173 = vld [vmem:[#allocation7 + $0x10] sm:$0xff]
    %v174 = vld [vmem:[#allocation7 + $0x18] sm:$0xff]
    %v175 = vld [vmem:[#allocation7 + $0x20] sm:$0xff]
    %v176 = vld [vmem:[#allocation7 + $0x28] sm:$0xff]
    %v177 = vld [vmem:[#allocation7 + $0x30] sm:$0xff]
    %v178 = vld [vmem:[#allocation7 + $0x38] sm:$0xff]
    %v179 = vld [vmem:[#allocation7 + $0x40] sm:$0xff]
    %v180 = vld [vmem:[#allocation7 + $0x48] sm:$0xff]
    %v181 = vld [vmem:[#allocation7 + $0x50] sm:$0xff]
    %v182 = vld [vmem:[#allocation7 + $0x58] sm:$0xff]
    %v183 = vld [vmem:[#allocation7 + $0x60] sm:$0xff]
    %v184 = vld [vmem:[#allocation7 + $0x68] sm:$0xff]
    %v185 = vld [vmem:[#allocation7 + $0x70] sm:$0xff]
    %v186 = vld [vmem:[#allocation7 + $0x78] sm:$0xff]
    %v187 = vld [vmem:[%s4] sm:$0x1]
    %v189 = vlaneseq
    %v190 = vshrl.u32 %v189, 7
    %v191 = vsub.s32 0, %v190
    %v192 = vrot.slane %v187, %v191
    %194 = vmatprep.subr.mxu0 0.0
    %195 = vmatpush1.msra.mxu0 %v171
    %196 = vmatprep.subr.mxu0 0.0
    %197 = vmatpush1.msra.mxu0 %v172
    %198 = vmatprep.subr.mxu0 0.0
    %199 = vmatpush1.msra.mxu0 %v173
    %200 = vmatprep.subr.mxu0 0.0
    %201 = vmatpush1.msra.mxu0 %v174
    %202 = vmatprep.subr.mxu0 0.0
    %203 = vmatpush1.msra.mxu0 %v175
    %204 = vmatprep.subr.mxu0 0.0
    %205 = vmatpush1.msra.mxu0 %v176
    %206 = vmatprep.subr.mxu0 0.0
    %207 = vmatpush1.msra.mxu0 %v177
    %208 = vmatprep.subr.mxu0 0.0
    %209 = vmatpush1.msra.mxu0 %v178
    %210 = vmatprep.subr.mxu0 0.0
    %211 = vmatpush1.msra.mxu0 %v179
    %212 = vmatprep.subr.mxu0 0.0
    %213 = vmatpush1.msra.mxu0 %v180
    %214 = vmatprep.subr.mxu0 0.0
    %215 = vmatpush1.msra.mxu0 %v181
    %216 = vmatprep.subr.mxu0 0.0
    %217 = vmatpush1.msra.mxu0 %v182
    %218 = vmatprep.subr.mxu0 0.0
    %219 = vmatpush1.msra.mxu0 %v183
    %220 = vmatprep.subr.mxu0 0.0
    %221 = vmatpush1.msra.mxu0 %v184
    %222 = vmatprep.subr.mxu0 0.0
    %223 = vmatpush1.msra.mxu0 %v185
    %224 = vmatprep.subr.mxu0 0.0
    %225 = vmatpush1.msra.mxu0 %v186
    %226 = vmatprep.subr.mxu0 0.0
    %227 = vmatpush1.msra.mxu0 0.0
    %228 = vmatprep.subr.mxu0 0.0
    %229 = vmatpush1.msra.mxu0 0.0
    %230 = vmatprep.subr.mxu0 0.0
    %231 = vmatpush1.msra.mxu0 0.0
    %232 = vmatprep.subr.mxu0 0.0
    %233 = vmatpush1.msra.mxu0 0.0
    %234 = vmatprep.subr.mxu0 0.0
    %235 = vmatpush1.msra.mxu0 0.0
    %236 = vmatprep.subr.mxu0 0.0
    %237 = vmatpush1.msra.mxu0 0.0
    %238 = vmatprep.subr.mxu0 0.0
    %239 = vmatpush1.msra.mxu0 0.0
    %240 = vmatprep.subr.mxu0 0.0
    %241 = vmatpush1.msra.mxu0 0.0
    %242 = vmatprep.subr.mxu0 0.0
    %243 = vmatpush1.msra.mxu0 0.0
    %244 = vmatprep.subr.mxu0 0.0
    %245 = vmatpush1.msra.mxu0 0.0
    %246 = vmatprep.subr.mxu0 0.0
    %247 = vmatpush1.msra.mxu0 0.0
    %248 = vmatprep.subr.mxu0 0.0
    %249 = vmatpush1.msra.mxu0 0.0
    %250 = vmatprep.subr.mxu0 0.0
    %251 = vmatpush1.msra.mxu0 0.0
    %252 = vmatprep.subr.mxu0 0.0
    %253 = vmatpush1.msra.mxu0 0.0
    %254 = vmatprep.subr.mxu0 0.0
    %255 = vmatpush1.msra.mxu0 0.0
    %256 = vmatprep.subr.mxu0 0.0
    %257 = vmatpush1.msra.mxu0 0.0
    %258 = vmatprep.mubr.f32.mxu0 0.0
    %259 = vmatmul.mubr.f32.gmra.mrb[0].mxu0 %v170
    %v260 = vpop.f32.mrb[0].mxu0
    %v261 = vadd.f32 %v192, %v260
    %v262 = vpop.f32.mrb[0].mxu0
    %263 = vdwg.mxu0
    %v264 = vsub.f32 0.0, %v261
    %v265 = vmul.f32 %v264, 1.442695
    %v266 = vpow.pop %v265
    %v267 = vadd.f32 %v266, 1.0
    %v268 = vrcp.pop %v267
    %v269 = vld [vmem:[#allocation8] sm:$0xff]
    %v270 = vld [vmem:[#allocation8 + $0x8] sm:$0xff]
    %v271 = vld [vmem:[#allocation8 + $0x10] sm:$0xff]
    %v272 = vld [vmem:[#allocation8 + $0x18] sm:$0xff]
    %v273 = vld [vmem:[#allocation8 + $0x20] sm:$0xff]
    %v274 = vld [vmem:[#allocation8 + $0x28] sm:$0xff]
    %v275 = vld [vmem:[#allocation8 + $0x30] sm:$0xff]
    %v276 = vld [vmem:[#allocation8 + $0x38] sm:$0xff]
    %v277 = vld [vmem:[#allocation8 + $0x40] sm:$0xff]
    %v278 = vld [vmem:[#allocation8 + $0x48] sm:$0xff]
    %v279 = vld [vmem:[#allocation8 + $0x50] sm:$0xff]
    %v280 = vld [vmem:[#allocation8 + $0x58] sm:$0xff]
    %v281 = vld [vmem:[#allocation8 + $0x60] sm:$0xff]
    %v282 = vld [vmem:[#allocation8 + $0x68] sm:$0xff]
    %v283 = vld [vmem:[#allocation8 + $0x70] sm:$0xff]
    %v284 = vld [vmem:[#allocation8 + $0x78] sm:$0xff]
    %v285 = vld [vmem:[%s6] sm:$0x1]
    %v287 = vlaneseq
    %v288 = vshrl.u32 %v287, 7
    %v289 = vsub.s32 0, %v288
    %v290 = vrot.slane %v285, %v289
    %292 = vmatprep.subr.mxu0 0.0
    %293 = vmatpush1.msra.mxu0 %v269
    %294 = vmatprep.subr.mxu0 0.0
    %295 = vmatpush1.msra.mxu0 %v270
    %296 = vmatprep.subr.mxu0 0.0
    %297 = vmatpush1.msra.mxu0 %v271
    %298 = vmatprep.subr.mxu0 0.0
    %299 = vmatpush1.msra.mxu0 %v272
    %300 = vmatprep.subr.mxu0 0.0
    %301 = vmatpush1.msra.mxu0 %v273
    %302 = vmatprep.subr.mxu0 0.0
    %303 = vmatpush1.msra.mxu0 %v274
    %304 = vmatprep.subr.mxu0 0.0
    %305 = vmatpush1.msra.mxu0 %v275
    %306 = vmatprep.subr.mxu0 0.0
    %307 = vmatpush1.msra.mxu0 %v276
    %308 = vmatprep.subr.mxu0 0.0
    %309 = vmatpush1.msra.mxu0 %v277
    %310 = vmatprep.subr.mxu0 0.0
    %311 = vmatpush1.msra.mxu0 %v278
    %312 = vmatprep.subr.mxu0 0.0
    %313 = vmatpush1.msra.mxu0 %v279
    %314 = vmatprep.subr.mxu0 0.0
    %315 = vmatpush1.msra.mxu0 %v280
    %316 = vmatprep.subr.mxu0 0.0
    %317 = vmatpush1.msra.mxu0 %v281
    %318 = vmatprep.subr.mxu0 0.0
    %319 = vmatpush1.msra.mxu0 %v282
    %320 = vmatprep.subr.mxu0 0.0
    %321 = vmatpush1.msra.mxu0 %v283
    %322 = vmatprep.subr.mxu0 0.0
    %323 = vmatpush1.msra.mxu0 %v284
    %324 = vmatprep.subr.mxu0 0.0
    %325 = vmatpush1.msra.mxu0 0.0
    %326 = vmatprep.subr.mxu0 0.0
    %327 = vmatpush1.msra.mxu0 0.0
    %328 = vmatprep.subr.mxu0 0.0
    %329 = vmatpush1.msra.mxu0 0.0
    %330 = vmatprep.subr.mxu0 0.0
    %331 = vmatpush1.msra.mxu0 0.0
    %332 = vmatprep.subr.mxu0 0.0
    %333 = vmatpush1.msra.mxu0 0.0
    %334 = vmatprep.subr.mxu0 0.0
    %335 = vmatpush1.msra.mxu0 0.0
    %336 = vmatprep.subr.mxu0 0.0
    %337 = vmatpush1.msra.mxu0 0.0
    %338 = vmatprep.subr.mxu0 0.0
    %339 = vmatpush1.msra.mxu0 0.0
    %340 = vmatprep.subr.mxu0 0.0
    %341 = vmatpush1.msra.mxu0 0.0
    %342 = vmatprep.subr.mxu0 0.0
    %343 = vmatpush1.msra.mxu0 0.0
    %344 = vmatprep.subr.mxu0 0.0
    %345 = vmatpush1.msra.mxu0 0.0
    %346 = vmatprep.subr.mxu0 0.0
    %347 = vmatpush1.msra.mxu0 0.0
    %348 = vmatprep.subr.mxu0 0.0
    %349 = vmatpush1.msra.mxu0 0.0
    %350 = vmatprep.subr.mxu0 0.0
    %351 = vmatpush1.msra.mxu0 0.0
    %352 = vmatprep.subr.mxu0 0.0
    %353 = vmatpush1.msra.mxu0 0.0
    %354 = vmatprep.subr.mxu0 0.0
    %355 = vmatpush1.msra.mxu0 0.0
    %356 = vmatprep.mubr.f32.mxu0 0.0
    %357 = vmatmul.mubr.f32.gmra.mrb[0].mxu0 %v268
    %v358 = vpop.f32.mrb[0].mxu0
    %v359 = vadd.f32 %v290, %v358
    %v360 = vpop.f32.mrb[0].mxu0
    %361 = vdwg.mxu0
    %v362 = vsub.f32 0.0, %v359
    %v363 = vmul.f32 %v362, 1.442695
    %v364 = vpow.pop %v363
    %v365 = vadd.f32 %v364, 1.0
    %v366 = vrcp.pop %v365
    %367 = vst [vmem:[#allocation10] sm:$0xff] %v366
    // Predicated region
    $region46: #{_forward.1} parent=1 // pred_check
      _
    $region47: #{_forward.1} parent=1 // pred_check_branch
      %369 = sbr.rel (0) target = $region49
    $region48: #{_forward.1} parent=1 // pred_region
      %s371 = ssub.s32 128, 128
      %372 = vsyncadd [#allocation4], %s371
      %s374 = sshll.u32 [#allocation10], 4
      %s375 = int_to_ptr.vmem [resolvable:$true] %s374
      %377 = dma.vmem_to_hbm [thread:$0]  %s375, 128, %s7, [#allocation4]
    $region49: #{_forward.1} parent=1 // pred_fallthru
      _
    // Predicated region
    $region50: #{_forward.1} parent=1 // pred_check
      _
    $region51: #{_forward.1} parent=1 // pred_check_branch
      %379 = sbr.rel (0) target = $region53
    $region52: #{_forward.1} parent=1 // pred_region
      %380 = dma.done [#allocation4], 128
    $region53: #{_forward.1} parent=1 // pred_fallthru
      _
    %381 = vsyncpa [#allocation3], 1
    %382 = vsyncpa [#allocation6], 1
    %383 = vsyncpa [#allocation9], 1
    %384 = vsyncpa [#allocation4], 1

</llo_original>
